<compile_context>
chip_gen: v5e
topology: v5e:2x2
jax: 0.10.0
libtpu: 0.0.40
codegen_flags: <defaults>
</compile_context>

<pallas_src>
import math
import functools

import jax
import jax.numpy as jnp
from jax import lax
from jax.experimental import pallas as pl
from jax.experimental.pallas import tpu as pltpu


# -----------------------------------------------------------------------------
# Fused kernel: patch-embed (x4) + bias/PE + per-head agent attention + merge.
# One grid step handles one batch element.
# -----------------------------------------------------------------------------
def _fused_kernel(pq_ref, pk_ref, pv_ref, pa_ref,
                  wq_ref, wk_ref, wv_ref, wa_ref,
                  bq_ref, bk_ref, bv_ref, ba_ref,
                  o_ref, *, num_heads, head_dim, scale):
    # ---- patch embedding: tokens = patches @ W + (bias + PE)  -> [N, D] ------
    def embed(p_ref, w_ref, b_ref):
        t = jnp.dot(p_ref[...], w_ref[...], preferred_element_type=jnp.float32)
        return t + b_ref[...]

    tq = embed(pq_ref, wq_ref, bq_ref)          # [N, D]
    tk = embed(pk_ref, wk_ref, bk_ref)
    tv = embed(pv_ref, wv_ref, bv_ref)
    ta = embed(pa_ref, wa_ref, ba_ref)

    N, D = tq.shape

    def fast_recip(x):                          # EUP vrcp + one Newton step
        r = pl.reciprocal(x, approx=True)
        return r * (2.0 - x * r)

    def softmax_rows(s):                        # numerically stable, last axis
        s = s - jnp.max(s, axis=-1, keepdims=True)
        e = jnp.exp(s)
        return e * fast_recip(jnp.sum(e, axis=-1, keepdims=True))

    # trans_b contraction: contract the last axis of both operands (no .T).
    trans_b = (((1,), (1,)), ((), ()))

    # Heads stay in the merged [N, D] lane layout; each head is selected with a
    # lane mask (exact zeros outside its dh columns) so no narrow slices,
    # concatenations or relayouts are needed and the output is a single store.
    lane = lax.broadcasted_iota(jnp.int32, (1, D), 1)

    acc = None
    for h in range(num_heads):                  # static unroll (nH is tiny)
        m = ((lane >= h * head_dim) &
             (lane < (h + 1) * head_dim)).astype(jnp.float32)   # [1, D]

        # Q = softmax(q_h @ a_h^T * scale)
        sq = lax.dot_general(tq * m, ta, trans_b,
                             preferred_element_type=jnp.float32) * scale
        Qm = softmax_rows(sq)                   # [N, N]

        # K = softmax(a_h @ k_h^T * scale)
        sk = lax.dot_general(ta * m, tk, trans_b,
                             preferred_element_type=jnp.float32) * scale
        Km = softmax_rows(sk)                   # [N, N]

        # A_h = Q @ (K @ v_h); lands in head-h lanes of the merged output.
        kv = jnp.dot(Km, tv * m, preferred_element_type=jnp.float32)   # [N, D]
        contrib = jnp.dot(Qm, kv, preferred_element_type=jnp.float32)  # [N, D]
        acc = contrib if acc is None else acc + contrib

    o_ref[...] = acc.astype(o_ref.dtype)


# -----------------------------------------------------------------------------
# Host-side helpers (pure layout / constants; fuse under jit)
# -----------------------------------------------------------------------------
def sinusoidal_pe(d_model, length):
    assert d_model % 2 == 0, "sinusoidal PE requires an even model dim"
    pos = jnp.arange(length, dtype=jnp.float32)[:, None]
    div = jnp.exp(jnp.arange(0, d_model, 2, dtype=jnp.float32)
                  * (-math.log(10000.0) / d_model))
    pe = jnp.zeros((length, d_model), dtype=jnp.float32)
    pe = pe.at[:, 0::2].set(jnp.sin(pos * div))
    pe = pe.at[:, 1::2].set(jnp.cos(pos * div))
    return pe


def _extract_patches(x, ps):
    """NCHW image -> [B, N, C*ps*ps] patch rows (flattened in (C, ph, pw))."""
    B, C, H, W = x.shape
    nh, nw = H // ps, W // ps
    return (x.reshape(B, C, nh, ps, nw, ps)
             .transpose(0, 2, 4, 1, 3, 5)
             .reshape(B, nh * nw, C * ps * ps))


# -----------------------------------------------------------------------------
# Public wrapper
# -----------------------------------------------------------------------------
@functools.partial(jax.jit, static_argnames=("patch_size", "hidden_dim", "num_heads"))
def vision_agent_attention(q_img, k_img, v_img, a_img, params, *,
                           patch_size, hidden_dim, num_heads):
    ps = patch_size
    D = hidden_dim
    assert D % num_heads == 0, "hidden_dim must be divisible by num_heads"
    assert D == ps * ps, "final spatial view requires hidden_dim == patch_size**2"
    head_dim = D // num_heads

    B = q_img.shape[0]
    nh, nw = q_img.shape[2] // ps, q_img.shape[3] // ps
    N = nh * nw
    side = int(round(N ** 0.5))
    assert side * side == N, "token count must be a perfect square"

    # Patch rows for all four streams (layout only; fused into the jit).
    pq = _extract_patches(q_img, ps)
    pk = _extract_patches(k_img, ps)
    pv = _extract_patches(v_img, ps)
    pa = _extract_patches(a_img, ps)

    # Conv weights -> [K, D] matmul form; fold bias + positional encoding into
    # one additive [N, D] term per stream (a single add inside the kernel).
    pe = sinusoidal_pe(D, N)
    prep_w = lambda w: w.reshape(D, -1).T
    prep_b = lambda b: b[None, :] + pe
    wq, wk, wv, wa = (prep_w(params[k]) for k in ("wq", "wk", "wv", "wa"))
    bq, bk, bv, ba = (prep_b(params[k]) for k in ("bq", "bk", "bv", "ba"))

    def per_batch(x):          # one batch row per grid step
        return pl.BlockSpec((None,) + x.shape[1:], lambda b: (b, 0, 0))

    def whole(x):              # weights / bias+PE: same block every step
        return pl.BlockSpec(x.shape, lambda b: (0, 0))

    scale = float(head_dim) ** -0.5
    tokens_out = pl.pallas_call(
        functools.partial(_fused_kernel, num_heads=num_heads,
                          head_dim=head_dim, scale=scale),
        out_shape=jax.ShapeDtypeStruct((B, N, D), jnp.float32),
        grid=(B,),
        in_specs=[per_batch(pq), per_batch(pk), per_batch(pv), per_batch(pa),
                  whole(wq), whole(wk), whole(wv), whole(wa),
                  whole(bq), whole(bk), whole(bv), whole(ba)],
        out_specs=pl.BlockSpec((None, N, D), lambda b: (b, 0, 0)),
        compiler_params=pltpu.CompilerParams(
            dimension_semantics=("parallel",)),
    )(pq, pk, pv, pa, wq, wk, wv, wa, bq, bk, bv, ba)

    # Final spatial re-assembly [B, N, D] -> [B, H, W] (pure layout, jit-fused).
    H = W = side * ps
    attn = (tokens_out.reshape(B, side, side, ps, ps)
                      .transpose(0, 1, 3, 2, 4)
                      .reshape(B, H, W))
    return attn


# -----------------------------------------------------------------------------
if __name__ == "__main__":
    # Config (hidden_dim must equal patch_size**2 for the final view, exactly
    # as the PyTorch forward implies).
    patch_size = 4
    hidden_dim = 16
    num_heads = 2
    qkva_channels = [4, 6, 8, 4]
    B, H_in, W_in = 2, 16, 16   # -> N = (16/4)^2 = 16 tokens

    key = jax.random.PRNGKey(0)
    keys = jax.random.split(key, 12)

    def conv_params(kw, kb, c_in):
        w = jax.random.normal(kw, (hidden_dim, c_in, patch_size, patch_size),
                              dtype=jnp.float32) * 0.02
        b = jax.random.normal(kb, (hidden_dim,), dtype=jnp.float32) * 0.02
        return w, b

    wq, bq = conv_params(keys[0], keys[1], qkva_channels[0])
    wk, bk = conv_params(keys[2], keys[3], qkva_channels[1])
    wv, bv = conv_params(keys[4], keys[5], qkva_channels[2])
    wa, ba = conv_params(keys[6], keys[7], qkva_channels[3])
    params = dict(wq=wq, bq=bq, wk=wk, bk=bk, wv=wv, bv=bv, wa=wa, ba=ba)

    q_img = jax.random.normal(keys[8], (B, qkva_channels[0], H_in, W_in), jnp.float32)
    k_img = jax.random.normal(keys[9], (B, qkva_channels[1], H_in, W_in), jnp.float32)
    v_img = jax.random.normal(keys[10], (B, qkva_channels[2], H_in, W_in), jnp.float32)
    a_img = jax.random.normal(keys[11], (B, qkva_channels[3], H_in, W_in), jnp.float32)

    out = vision_agent_attention(q_img, k_img, v_img, a_img, params,
                                 patch_size=patch_size, hidden_dim=hidden_dim,
                                 num_heads=num_heads)
    jax.block_until_ready(out)
    assert out.shape == (B, H_in, W_in), out.shape
    print("KERNEL_OK")
</pallas_src>

<mosaic_0001>
module attributes {stable_mosaic.version = 11 : i64} {
  func.func @_fused_kernel(%arg0: i32, %arg1: memref<1x16x64xf32, #tpu.memory_space<vmem>>, %arg2: memref<1x16x96xf32, #tpu.memory_space<vmem>>, %arg3: memref<1x16x128xf32, #tpu.memory_space<vmem>>, %arg4: memref<1x16x64xf32, #tpu.memory_space<vmem>>, %arg5: memref<64x16xf32, #tpu.memory_space<vmem>>, %arg6: memref<96x16xf32, #tpu.memory_space<vmem>>, %arg7: memref<128x16xf32, #tpu.memory_space<vmem>>, %arg8: memref<64x16xf32, #tpu.memory_space<vmem>>, %arg9: memref<16x16xf32, #tpu.memory_space<vmem>>, %arg10: memref<16x16xf32, #tpu.memory_space<vmem>>, %arg11: memref<16x16xf32, #tpu.memory_space<vmem>>, %arg12: memref<16x16xf32, #tpu.memory_space<vmem>>, %arg13: memref<1x16x16xf32, #tpu.memory_space<vmem>>) attributes {dimension_semantics = [#tpu.dimension_semantics<parallel>], iteration_bounds = array<i64: 2>, scalar_prefetch = 0 : i64, scratch_operands = 0 : i64, tpu.core_type = #tpu.core_type<tc>, window_params = [{transform_indices = @transform_0, window_bounds = array<i64: 1, 16, 64>}, {transform_indices = @transform_1, window_bounds = array<i64: 1, 16, 96>}, {transform_indices = @transform_2, window_bounds = array<i64: 1, 16, 128>}, {transform_indices = @transform_3, window_bounds = array<i64: 1, 16, 64>}, {pipeline_mode = #tpu.pipeline_mode<synchronous>, transform_indices = @transform_4, window_bounds = array<i64: 64, 16>}, {pipeline_mode = #tpu.pipeline_mode<synchronous>, transform_indices = @transform_5, window_bounds = array<i64: 96, 16>}, {pipeline_mode = #tpu.pipeline_mode<synchronous>, transform_indices = @transform_6, window_bounds = array<i64: 128, 16>}, {pipeline_mode = #tpu.pipeline_mode<synchronous>, transform_indices = @transform_7, window_bounds = array<i64: 64, 16>}, {pipeline_mode = #tpu.pipeline_mode<synchronous>, transform_indices = @transform_8, window_bounds = array<i64: 16, 16>}, {pipeline_mode = #tpu.pipeline_mode<synchronous>, transform_indices = @transform_9, window_bounds = array<i64: 16, 16>}, {pipeline_mode = #tpu.pipeline_mode<synchronous>, transform_indices = @transform_10, window_bounds = array<i64: 16, 16>}, {pipeline_mode = #tpu.pipeline_mode<synchronous>, transform_indices = @transform_11, window_bounds = array<i64: 16, 16>}, {transform_indices = @transform_12, window_bounds = array<i64: 1, 16, 16>}]} {
    %c0 = arith.constant 0 : index
    %c0_0 = arith.constant 0 : index
    %c0_1 = arith.constant 0 : index
    %0 = vector.load %arg1[%c0, %c0_0, %c0_1] : memref<1x16x64xf32, #tpu.memory_space<vmem>>, vector<1x16x64xf32>
    %1 = vector.shape_cast %0 : vector<1x16x64xf32> to vector<16x64xf32>
    %c0_2 = arith.constant 0 : index
    %c0_3 = arith.constant 0 : index
    %2 = vector.load %arg5[%c0_2, %c0_3] : memref<64x16xf32, #tpu.memory_space<vmem>>, vector<64x16xf32>
    %cst = arith.constant dense<0.000000e+00> : vector<16x16xf32>
    %3 = tpu.matmul %1, %2, %cst {dimension_numbers = #tpu.dot_dimension_numbers<[1], [0], [0], [1], [0, 0, 1, 1], [], []>} : vector<16x64xf32>, vector<64x16xf32>, vector<16x16xf32> -> vector<16x16xf32>
    %c0_4 = arith.constant 0 : index
    %c0_5 = arith.constant 0 : index
    %4 = vector.load %arg9[%c0_4, %c0_5] : memref<16x16xf32, #tpu.memory_space<vmem>>, vector<16x16xf32>
    %5 = arith.addf %3, %4 : vector<16x16xf32>
    %c0_6 = arith.constant 0 : index
    %c0_7 = arith.constant 0 : index
    %c0_8 = arith.constant 0 : index
    %6 = vector.load %arg2[%c0_6, %c0_7, %c0_8] : memref<1x16x96xf32, #tpu.memory_space<vmem>>, vector<1x16x96xf32>
    %7 = vector.shape_cast %6 : vector<1x16x96xf32> to vector<16x96xf32>
    %c0_9 = arith.constant 0 : index
    %c0_10 = arith.constant 0 : index
    %8 = vector.load %arg6[%c0_9, %c0_10] : memref<96x16xf32, #tpu.memory_space<vmem>>, vector<96x16xf32>
    %cst_11 = arith.constant dense<0.000000e+00> : vector<16x16xf32>
    %9 = tpu.matmul %7, %8, %cst_11 {dimension_numbers = #tpu.dot_dimension_numbers<[1], [0], [0], [1], [0, 0, 1, 1], [], []>} : vector<16x96xf32>, vector<96x16xf32>, vector<16x16xf32> -> vector<16x16xf32>
    %c0_12 = arith.constant 0 : index
    %c0_13 = arith.constant 0 : index
    %10 = vector.load %arg10[%c0_12, %c0_13] : memref<16x16xf32, #tpu.memory_space<vmem>>, vector<16x16xf32>
    %11 = arith.addf %9, %10 : vector<16x16xf32>
    %c0_14 = arith.constant 0 : index
    %c0_15 = arith.constant 0 : index
    %c0_16 = arith.constant 0 : index
    %12 = vector.load %arg3[%c0_14, %c0_15, %c0_16] : memref<1x16x128xf32, #tpu.memory_space<vmem>>, vector<1x16x128xf32>
    %13 = vector.shape_cast %12 : vector<1x16x128xf32> to vector<16x128xf32>
    %c0_17 = arith.constant 0 : index
    %c0_18 = arith.constant 0 : index
    %14 = vector.load %arg7[%c0_17, %c0_18] : memref<128x16xf32, #tpu.memory_space<vmem>>, vector<128x16xf32>
    %cst_19 = arith.constant dense<0.000000e+00> : vector<16x16xf32>
    %15 = tpu.matmul %13, %14, %cst_19 {dimension_numbers = #tpu.dot_dimension_numbers<[1], [0], [0], [1], [0, 0, 1, 1], [], []>} : vector<16x128xf32>, vector<128x16xf32>, vector<16x16xf32> -> vector<16x16xf32>
    %c0_20 = arith.constant 0 : index
    %c0_21 = arith.constant 0 : index
    %16 = vector.load %arg11[%c0_20, %c0_21] : memref<16x16xf32, #tpu.memory_space<vmem>>, vector<16x16xf32>
    %17 = arith.addf %15, %16 : vector<16x16xf32>
    %c0_22 = arith.constant 0 : index
    %c0_23 = arith.constant 0 : index
    %c0_24 = arith.constant 0 : index
    %18 = vector.load %arg4[%c0_22, %c0_23, %c0_24] : memref<1x16x64xf32, #tpu.memory_space<vmem>>, vector<1x16x64xf32>
    %19 = vector.shape_cast %18 : vector<1x16x64xf32> to vector<16x64xf32>
    %c0_25 = arith.constant 0 : index
    %c0_26 = arith.constant 0 : index
    %20 = vector.load %arg8[%c0_25, %c0_26] : memref<64x16xf32, #tpu.memory_space<vmem>>, vector<64x16xf32>
    %cst_27 = arith.constant dense<0.000000e+00> : vector<16x16xf32>
    %21 = tpu.matmul %19, %20, %cst_27 {dimension_numbers = #tpu.dot_dimension_numbers<[1], [0], [0], [1], [0, 0, 1, 1], [], []>} : vector<16x64xf32>, vector<64x16xf32>, vector<16x16xf32> -> vector<16x16xf32>
    %c0_28 = arith.constant 0 : index
    %c0_29 = arith.constant 0 : index
    %22 = vector.load %arg12[%c0_28, %c0_29] : memref<16x16xf32, #tpu.memory_space<vmem>>, vector<16x16xf32>
    %23 = arith.addf %21, %22 : vector<16x16xf32>
    %24 = tpu.iota {dimensions = array<i32: 1>} : vector<1x16xi32>
    %c0_i32 = arith.constant 0 : i32
    %25 = vector.broadcast %c0_i32 : i32 to vector<1x16xi32>
    %26 = arith.cmpi sge, %24, %25 : vector<1x16xi32>
    %c8_i32 = arith.constant 8 : i32
    %27 = vector.broadcast %c8_i32 : i32 to vector<1x16xi32>
    %28 = arith.cmpi slt, %24, %27 : vector<1x16xi32>
    %29 = arith.andi %26, %28 : vector<1x16xi1>
    %30 = arith.extui %29 : vector<1x16xi1> to vector<1x16xi32>
    %31 = arith.sitofp %30 : vector<1x16xi32> to vector<1x16xf32>
    %32 = vector.broadcast %31 : vector<1x16xf32> to vector<16x16xf32>
    %33 = arith.mulf %5, %32 : vector<16x16xf32>
    %cst_30 = arith.constant dense<0.000000e+00> : vector<16x16xf32>
    %34 = tpu.matmul %33, %23, %cst_30 {dimension_numbers = #tpu.dot_dimension_numbers<[1], [1], [0], [0], [0, 0, 1, 0], [], []>} : vector<16x16xf32>, vector<16x16xf32>, vector<16x16xf32> -> vector<16x16xf32>
    %cst_31 = arith.constant 0.353553385 : f32
    %35 = vector.broadcast %cst_31 : f32 to vector<16x16xf32>
    %36 = arith.mulf %34, %35 : vector<16x16xf32>
    %cst_32 = arith.constant dense<0xFF800000> : vector<16xf32>
    %37 = vector.multi_reduction <maximumf>, %36, %cst_32 [1] : vector<16x16xf32> to vector<16xf32>
    %38 = vector.shape_cast %37 : vector<16xf32> to vector<16x1xf32>
    %39 = vector.broadcast %38 : vector<16x1xf32> to vector<16x16xf32>
    %40 = arith.subf %36, %39 : vector<16x16xf32>
    %41 = math.exp %40 : vector<16x16xf32>
    %cst_33 = arith.constant dense<0.000000e+00> : vector<16xf32>
    %42 = vector.multi_reduction <add>, %41, %cst_33 [1] : vector<16x16xf32> to vector<16xf32>
    %43 = vector.shape_cast %42 : vector<16xf32> to vector<16x1xf32>
    %44 = tpu.reciprocal %43 {approx = true} : vector<16x1xf32> -> vector<16x1xf32>
    %45 = arith.mulf %43, %44 : vector<16x1xf32>
    %cst_34 = arith.constant 2.000000e+00 : f32
    %46 = vector.broadcast %cst_34 : f32 to vector<16x1xf32>
    %47 = arith.subf %46, %45 : vector<16x1xf32>
    %48 = arith.mulf %44, %47 : vector<16x1xf32>
    %49 = vector.broadcast %48 : vector<16x1xf32> to vector<16x16xf32>
    %50 = arith.mulf %41, %49 : vector<16x16xf32>
    %51 = vector.broadcast %31 : vector<1x16xf32> to vector<16x16xf32>
    %52 = arith.mulf %23, %51 : vector<16x16xf32>
    %cst_35 = arith.constant dense<0.000000e+00> : vector<16x16xf32>
    %53 = tpu.matmul %52, %11, %cst_35 {dimension_numbers = #tpu.dot_dimension_numbers<[1], [1], [0], [0], [0, 0, 1, 0], [], []>} : vector<16x16xf32>, vector<16x16xf32>, vector<16x16xf32> -> vector<16x16xf32>
    %cst_36 = arith.constant 0.353553385 : f32
    %54 = vector.broadcast %cst_36 : f32 to vector<16x16xf32>
    %55 = arith.mulf %53, %54 : vector<16x16xf32>
    %cst_37 = arith.constant dense<0xFF800000> : vector<16xf32>
    %56 = vector.multi_reduction <maximumf>, %55, %cst_37 [1] : vector<16x16xf32> to vector<16xf32>
    %57 = vector.shape_cast %56 : vector<16xf32> to vector<16x1xf32>
    %58 = vector.broadcast %57 : vector<16x1xf32> to vector<16x16xf32>
    %59 = arith.subf %55, %58 : vector<16x16xf32>
    %60 = math.exp %59 : vector<16x16xf32>
    %cst_38 = arith.constant dense<0.000000e+00> : vector<16xf32>
    %61 = vector.multi_reduction <add>, %60, %cst_38 [1] : vector<16x16xf32> to vector<16xf32>
    %62 = vector.shape_cast %61 : vector<16xf32> to vector<16x1xf32>
    %63 = tpu.reciprocal %62 {approx = true} : vector<16x1xf32> -> vector<16x1xf32>
    %64 = arith.mulf %62, %63 : vector<16x1xf32>
    %cst_39 = arith.constant 2.000000e+00 : f32
    %65 = vector.broadcast %cst_39 : f32 to vector<16x1xf32>
    %66 = arith.subf %65, %64 : vector<16x1xf32>
    %67 = arith.mulf %63, %66 : vector<16x1xf32>
    %68 = vector.broadcast %67 : vector<16x1xf32> to vector<16x16xf32>
    %69 = arith.mulf %60, %68 : vector<16x16xf32>
    %70 = vector.broadcast %31 : vector<1x16xf32> to vector<16x16xf32>
    %71 = arith.mulf %17, %70 : vector<16x16xf32>
    %cst_40 = arith.constant dense<0.000000e+00> : vector<16x16xf32>
    %72 = tpu.matmul %69, %71, %cst_40 {dimension_numbers = #tpu.dot_dimension_numbers<[1], [0], [0], [1], [0, 0, 1, 1], [], []>} : vector<16x16xf32>, vector<16x16xf32>, vector<16x16xf32> -> vector<16x16xf32>
    %cst_41 = arith.constant dense<0.000000e+00> : vector<16x16xf32>
    %73 = tpu.matmul %50, %72, %cst_41 {dimension_numbers = #tpu.dot_dimension_numbers<[1], [0], [0], [1], [0, 0, 1, 1], [], []>} : vector<16x16xf32>, vector<16x16xf32>, vector<16x16xf32> -> vector<16x16xf32>
    %c8_i32_42 = arith.constant 8 : i32
    %74 = vector.broadcast %c8_i32_42 : i32 to vector<1x16xi32>
    %75 = arith.cmpi sge, %24, %74 : vector<1x16xi32>
    %c16_i32 = arith.constant 16 : i32
    %76 = vector.broadcast %c16_i32 : i32 to vector<1x16xi32>
    %77 = arith.cmpi slt, %24, %76 : vector<1x16xi32>
    %78 = arith.andi %75, %77 : vector<1x16xi1>
    %79 = arith.extui %78 : vector<1x16xi1> to vector<1x16xi32>
    %80 = arith.sitofp %79 : vector<1x16xi32> to vector<1x16xf32>
    %81 = vector.broadcast %80 : vector<1x16xf32> to vector<16x16xf32>
    %82 = arith.mulf %5, %81 : vector<16x16xf32>
    %cst_43 = arith.constant dense<0.000000e+00> : vector<16x16xf32>
    %83 = tpu.matmul %82, %23, %cst_43 {dimension_numbers = #tpu.dot_dimension_numbers<[1], [1], [0], [0], [0, 0, 1, 0], [], []>} : vector<16x16xf32>, vector<16x16xf32>, vector<16x16xf32> -> vector<16x16xf32>
    %cst_44 = arith.constant 0.353553385 : f32
    %84 = vector.broadcast %cst_44 : f32 to vector<16x16xf32>
    %85 = arith.mulf %83, %84 : vector<16x16xf32>
    %cst_45 = arith.constant dense<0xFF800000> : vector<16xf32>
    %86 = vector.multi_reduction <maximumf>, %85, %cst_45 [1] : vector<16x16xf32> to vector<16xf32>
    %87 = vector.shape_cast %86 : vector<16xf32> to vector<16x1xf32>
    %88 = vector.broadcast %87 : vector<16x1xf32> to vector<16x16xf32>
    %89 = arith.subf %85, %88 : vector<16x16xf32>
    %90 = math.exp %89 : vector<16x16xf32>
    %cst_46 = arith.constant dense<0.000000e+00> : vector<16xf32>
    %91 = vector.multi_reduction <add>, %90, %cst_46 [1] : vector<16x16xf32> to vector<16xf32>
    %92 = vector.shape_cast %91 : vector<16xf32> to vector<16x1xf32>
    %93 = tpu.reciprocal %92 {approx = true} : vector<16x1xf32> -> vector<16x1xf32>
    %94 = arith.mulf %92, %93 : vector<16x1xf32>
    %cst_47 = arith.constant 2.000000e+00 : f32
    %95 = vector.broadcast %cst_47 : f32 to vector<16x1xf32>
    %96 = arith.subf %95, %94 : vector<16x1xf32>
    %97 = arith.mulf %93, %96 : vector<16x1xf32>
    %98 = vector.broadcast %97 : vector<16x1xf32> to vector<16x16xf32>
    %99 = arith.mulf %90, %98 : vector<16x16xf32>
    %100 = vector.broadcast %80 : vector<1x16xf32> to vector<16x16xf32>
    %101 = arith.mulf %23, %100 : vector<16x16xf32>
    %cst_48 = arith.constant dense<0.000000e+00> : vector<16x16xf32>
    %102 = tpu.matmul %101, %11, %cst_48 {dimension_numbers = #tpu.dot_dimension_numbers<[1], [1], [0], [0], [0, 0, 1, 0], [], []>} : vector<16x16xf32>, vector<16x16xf32>, vector<16x16xf32> -> vector<16x16xf32>
    %cst_49 = arith.constant 0.353553385 : f32
    %103 = vector.broadcast %cst_49 : f32 to vector<16x16xf32>
    %104 = arith.mulf %102, %103 : vector<16x16xf32>
    %cst_50 = arith.constant dense<0xFF800000> : vector<16xf32>
    %105 = vector.multi_reduction <maximumf>, %104, %cst_50 [1] : vector<16x16xf32> to vector<16xf32>
    %106 = vector.shape_cast %105 : vector<16xf32> to vector<16x1xf32>
    %107 = vector.broadcast %106 : vector<16x1xf32> to vector<16x16xf32>
    %108 = arith.subf %104, %107 : vector<16x16xf32>
    %109 = math.exp %108 : vector<16x16xf32>
    %cst_51 = arith.constant dense<0.000000e+00> : vector<16xf32>
    %110 = vector.multi_reduction <add>, %109, %cst_51 [1] : vector<16x16xf32> to vector<16xf32>
    %111 = vector.shape_cast %110 : vector<16xf32> to vector<16x1xf32>
    %112 = tpu.reciprocal %111 {approx = true} : vector<16x1xf32> -> vector<16x1xf32>
    %113 = arith.mulf %111, %112 : vector<16x1xf32>
    %cst_52 = arith.constant 2.000000e+00 : f32
    %114 = vector.broadcast %cst_52 : f32 to vector<16x1xf32>
    %115 = arith.subf %114, %113 : vector<16x1xf32>
    %116 = arith.mulf %112, %115 : vector<16x1xf32>
    %117 = vector.broadcast %116 : vector<16x1xf32> to vector<16x16xf32>
    %118 = arith.mulf %109, %117 : vector<16x16xf32>
    %119 = vector.broadcast %80 : vector<1x16xf32> to vector<16x16xf32>
    %120 = arith.mulf %17, %119 : vector<16x16xf32>
    %cst_53 = arith.constant dense<0.000000e+00> : vector<16x16xf32>
    %121 = tpu.matmul %118, %120, %cst_53 {dimension_numbers = #tpu.dot_dimension_numbers<[1], [0], [0], [1], [0, 0, 1, 1], [], []>} : vector<16x16xf32>, vector<16x16xf32>, vector<16x16xf32> -> vector<16x16xf32>
    %cst_54 = arith.constant dense<0.000000e+00> : vector<16x16xf32>
    %122 = tpu.matmul %99, %121, %cst_54 {dimension_numbers = #tpu.dot_dimension_numbers<[1], [0], [0], [1], [0, 0, 1, 1], [], []>} : vector<16x16xf32>, vector<16x16xf32>, vector<16x16xf32> -> vector<16x16xf32>
    %123 = arith.addf %73, %122 : vector<16x16xf32>
    %c0_55 = arith.constant 0 : index
    %c0_56 = arith.constant 0 : index
    %c0_57 = arith.constant 0 : index
    %124 = vector.load %arg13[%c0_55, %c0_56, %c0_57] : memref<1x16x16xf32, #tpu.memory_space<vmem>>, vector<1x16x16xf32>
    %125 = vector.shape_cast %124 : vector<1x16x16xf32> to vector<16x16xf32>
    %126 = vector.shape_cast %123 : vector<16x16xf32> to vector<1x16x16xf32>
    tpu.vector_store %arg13[%c0_55, %c0_56, %c0_57], %126 {strides = array<i32>} : memref<1x16x16xf32, #tpu.memory_space<vmem>>, vector<1x16x16xf32>,
    return
  }
  func.func @transform_0(%arg0: i32) -> (i32, i32, i32) {
    %c0_i32 = arith.constant 0 : i32
    %c0_i32_0 = arith.constant 0 : i32
    %c0_i32_1 = arith.constant 0 : i32
    return %arg0, %c0_i32, %c0_i32_0 : i32, i32, i32
  }
  func.func @transform_1(%arg0: i32) -> (i32, i32, i32) {
    %c0_i32 = arith.constant 0 : i32
    %c0_i32_0 = arith.constant 0 : i32
    %c0_i32_1 = arith.constant 0 : i32
    return %arg0, %c0_i32, %c0_i32_0 : i32, i32, i32
  }
  func.func @transform_2(%arg0: i32) -> (i32, i32, i32) {
    %c0_i32 = arith.constant 0 : i32
    %c0_i32_0 = arith.constant 0 : i32
    %c0_i32_1 = arith.constant 0 : i32
    return %arg0, %c0_i32, %c0_i32_0 : i32, i32, i32
  }
  func.func @transform_3(%arg0: i32) -> (i32, i32, i32) {
    %c0_i32 = arith.constant 0 : i32
    %c0_i32_0 = arith.constant 0 : i32
    %c0_i32_1 = arith.constant 0 : i32
    return %arg0, %c0_i32, %c0_i32_0 : i32, i32, i32
  }
  func.func @transform_4(%arg0: i32) -> (i32, i32) {
    %c0_i32 = arith.constant 0 : i32
    %c0_i32_0 = arith.constant 0 : i32
    %c0_i32_1 = arith.constant 0 : i32
    return %c0_i32, %c0_i32_0 : i32, i32
  }
  func.func @transform_5(%arg0: i32) -> (i32, i32) {
    %c0_i32 = arith.constant 0 : i32
    %c0_i32_0 = arith.constant 0 : i32
    %c0_i32_1 = arith.constant 0 : i32
    return %c0_i32, %c0_i32_0 : i32, i32
  }
  func.func @transform_6(%arg0: i32) -> (i32, i32) {
    %c0_i32 = arith.constant 0 : i32
    %c0_i32_0 = arith.constant 0 : i32
    %c0_i32_1 = arith.constant 0 : i32
    return %c0_i32, %c0_i32_0 : i32, i32
  }
  func.func @transform_7(%arg0: i32) -> (i32, i32) {
    %c0_i32 = arith.constant 0 : i32
    %c0_i32_0 = arith.constant 0 : i32
    %c0_i32_1 = arith.constant 0 : i32
    return %c0_i32, %c0_i32_0 : i32, i32
  }
  func.func @transform_8(%arg0: i32) -> (i32, i32) {
    %c0_i32 = arith.constant 0 : i32
    %c0_i32_0 = arith.constant 0 : i32
    %c0_i32_1 = arith.constant 0 : i32
    return %c0_i32, %c0_i32_0 : i32, i32
  }
  func.func @transform_9(%arg0: i32) -> (i32, i32) {
    %c0_i32 = arith.constant 0 : i32
    %c0_i32_0 = arith.constant 0 : i32
    %c0_i32_1 = arith.constant 0 : i32
    return %c0_i32, %c0_i32_0 : i32, i32
  }
  func.func @transform_10(%arg0: i32) -> (i32, i32) {
    %c0_i32 = arith.constant 0 : i32
    %c0_i32_0 = arith.constant 0 : i32
    %c0_i32_1 = arith.constant 0 : i32
    return %c0_i32, %c0_i32_0 : i32, i32
  }
  func.func @transform_11(%arg0: i32) -> (i32, i32) {
    %c0_i32 = arith.constant 0 : i32
    %c0_i32_0 = arith.constant 0 : i32
    %c0_i32_1 = arith.constant 0 : i32
    return %c0_i32, %c0_i32_0 : i32, i32
  }
  func.func @transform_12(%arg0: i32) -> (i32, i32, i32) {
    %c0_i32 = arith.constant 0 : i32
    %c0_i32_0 = arith.constant 0 : i32
    %c0_i32_1 = arith.constant 0 : i32
    return %arg0, %c0_i32, %c0_i32_0 : i32, i32, i32
  }
}

</mosaic_0001>

<llo_original>
// kernel: vision_agent_attention.1
$region0: #{vision_agent_attention.1}
  #allocation0 [shape = 'u32[]', space=smem, size = 0x4, offset = 0x4, fixed_abs, tag = 'smem constant byte address 0x4 - core index']
  #allocation1 [shape = 'u32[72,128]{1,0:T(1,128)}', space=vmem, size = 0x9000, scoped, tag = 'internal scratch']
  %s0 = inlined_call_operand.vmem [shape: f32[2,16,64], index: 0, kind: input, shape index: {}]
  %s1 = inlined_call_operand.vmem [shape: f32[2,16,96], index: 1, kind: input, shape index: {}]
  %s2 = inlined_call_operand.vmem [shape: f32[2,16,128], index: 2, kind: input, shape index: {}]
  %s3 = inlined_call_operand.vmem [shape: f32[2,16,64], index: 3, kind: input, shape index: {}]
  %s4 = inlined_call_operand.vmem [shape: f32[64,16], index: 4, kind: input, shape index: {}]
  %s5 = inlined_call_operand.vmem [shape: f32[96,16], index: 5, kind: input, shape index: {}]
  %s6 = inlined_call_operand.vmem [shape: f32[128,16], index: 6, kind: input, shape index: {}]
  %s7 = inlined_call_operand.vmem [shape: f32[64,16], index: 7, kind: input, shape index: {}]
  %s8 = inlined_call_operand.vmem [shape: f32[16,16], index: 8, kind: input, shape index: {}]
  %s9 = inlined_call_operand.vmem [shape: f32[16,16], index: 9, kind: input, shape index: {}]
  %s10 = inlined_call_operand.vmem [shape: f32[16,16], index: 10, kind: input, shape index: {}]
  %s11 = inlined_call_operand.vmem [shape: f32[16,16], index: 11, kind: input, shape index: {}]
  %s12 = inlined_call_operand.vmem [shape: f32[2,16,16], index: 12, kind: output, shape index: {}]
  %s13 = sld [smem:[#allocation0]]
  $region81: #{vision_agent_attention.1} parent=0
    _
  %s15 = ssub.s32 1, %s13
  %s16 = scalar_select 0, %s15, %s13
  loop: start=0, step=1, limit=4
  $region2: #{vision_agent_attention.1} parent=0 // loop_pre_header
    _
  $region3: #{vision_agent_attention.1} parent=0 // loop_header
    %s18 = sphi 0, %s22
    %p19 = scmp.ge.s32.totalorder %s18, 4
    %s28 = sphi 0, %s30
    %s31 = sphi 0, %s28
    %s32 = sphi 0, %s31
    %s48 = sphi 0, %s32
    %s54 = sphi 0, %s56
    %s57 = sphi 0, %s54
    %s58 = sphi 0, %s57
    %s74 = sphi 0, %s58
    %s80 = sphi 0, %s82
    %s83 = sphi 0, %s80
    %s84 = sphi 0, %s83
    %s100 = sphi 0, %s84
    %s106 = sphi 0, %s108
    %s109 = sphi 0, %s106
    %s110 = sphi 0, %s109
    %s126 = sphi 0, %s110
    %s130 = sphi 0, %s130
    %s132 = sphi 0, %s130
    %s133 = sphi 0, %s132
    %s147 = sphi 0, %s133
    %s151 = sphi 0, %s151
    %s153 = sphi 0, %s151
    %s154 = sphi 0, %s153
    %s168 = sphi 0, %s154
    %s172 = sphi 0, %s172
    %s174 = sphi 0, %s172
    %s175 = sphi 0, %s174
    %s189 = sphi 0, %s175
    %s193 = sphi 0, %s193
    %s195 = sphi 0, %s193
    %s196 = sphi 0, %s195
    %s210 = sphi 0, %s196
    %s214 = sphi 0, %s214
    %s216 = sphi 0, %s214
    %s217 = sphi 0, %s216
    %s231 = sphi 0, %s217
    %s235 = sphi 0, %s235
    %s237 = sphi 0, %s235
    %s238 = sphi 0, %s237
    %s252 = sphi 0, %s238
    %s256 = sphi 0, %s256
    %s258 = sphi 0, %s256
    %s259 = sphi 0, %s258
    %s273 = sphi 0, %s259
    %s277 = sphi 0, %s277
    %s279 = sphi 0, %s277
    %s280 = sphi 0, %s279
    %s294 = sphi 0, %s280
    %s300 = sphi 0, %s302
    %s303 = sphi 0, %s300
    %s304 = sphi 0, %s303
    %s320 = sphi 0, %s304
  $region4: #{vision_agent_attention.1} parent=0 // loop_header_branch
    %21 = sbr.rel (%p19) target = $region8
  $region5: #{vision_agent_attention.1} parent=0 // loop_body
    %s23 = ssub.s32 %s18, 1
    %s24 = ssub.s32 %s18, 2
    %s25 = sadd.s32 %s18, 1
    %s26 = ssub.s32 %s18, %s25
    %p27 = scmp.eq.s32.totalorder %s26, 0
    %s29 = sadd.s32 %s28, 1
    %s30 = scalar_select %p27, %s28, %s29
    %p33 = pneg %p27
    %p34 = scmp.eq.s32.totalorder %s18, 1
    %p35 = por %p33, %p34
    %p36 = scmp.ne.s32.totalorder %s28, %s31
    %p37 = scmp.eq.s32.totalorder %s18, 0
    %p38 = por %p36, %p37
    %p39 = scmp.ne.s32.totalorder %s28, %s31
    %p40 = scmp.eq.s32.totalorder %s23, 1
    %p41 = por %p39, %p40
    %p42 = scmp.ne.s32.totalorder %s31, %s32
    %p43 = scmp.eq.s32.totalorder %s23, 0
    %p44 = por %p42, %p43
    %p45 = scmp.ne.s32.totalorder %s31, %s32
    %p46 = scmp.eq.s32.totalorder %s24, 1
    %p47 = por %p45, %p46
    %p49 = scmp.ne.s32.totalorder %s32, %s48
    %p50 = scmp.eq.s32.totalorder %s24, 0
    %p51 = por %p49, %p50
    %s52 = ssub.s32 %s18, %s25
    %p53 = scmp.eq.s32.totalorder %s52, 0
    %s55 = sadd.s32 %s54, 1
    %s56 = scalar_select %p53, %s54, %s55
    %p59 = pneg %p53
    %p60 = scmp.eq.s32.totalorder %s18, 1
    %p61 = por %p59, %p60
    %p62 = scmp.ne.s32.totalorder %s54, %s57
    %p63 = scmp.eq.s32.totalorder %s18, 0
    %p64 = por %p62, %p63
    %p65 = scmp.ne.s32.totalorder %s54, %s57
    %p66 = scmp.eq.s32.totalorder %s23, 1
    %p67 = por %p65, %p66
    %p68 = scmp.ne.s32.totalorder %s57, %s58
    %p69 = scmp.eq.s32.totalorder %s23, 0
    %p70 = por %p68, %p69
    %p71 = scmp.ne.s32.totalorder %s57, %s58
    %p72 = scmp.eq.s32.totalorder %s24, 1
    %p73 = por %p71, %p72
    %p75 = scmp.ne.s32.totalorder %s58, %s74
    %p76 = scmp.eq.s32.totalorder %s24, 0
    %p77 = por %p75, %p76
    %s78 = ssub.s32 %s18, %s25
    %p79 = scmp.eq.s32.totalorder %s78, 0
    %s81 = sadd.s32 %s80, 1
    %s82 = scalar_select %p79, %s80, %s81
    %p85 = pneg %p79
    %p86 = scmp.eq.s32.totalorder %s18, 1
    %p87 = por %p85, %p86
    %p88 = scmp.ne.s32.totalorder %s80, %s83
    %p89 = scmp.eq.s32.totalorder %s18, 0
    %p90 = por %p88, %p89
    %p91 = scmp.ne.s32.totalorder %s80, %s83
    %p92 = scmp.eq.s32.totalorder %s23, 1
    %p93 = por %p91, %p92
    %p94 = scmp.ne.s32.totalorder %s83, %s84
    %p95 = scmp.eq.s32.totalorder %s23, 0
    %p96 = por %p94, %p95
    %p97 = scmp.ne.s32.totalorder %s83, %s84
    %p98 = scmp.eq.s32.totalorder %s24, 1
    %p99 = por %p97, %p98
    %p101 = scmp.ne.s32.totalorder %s84, %s100
    %p102 = scmp.eq.s32.totalorder %s24, 0
    %p103 = por %p101, %p102
    %s104 = ssub.s32 %s18, %s25
    %p105 = scmp.eq.s32.totalorder %s104, 0
    %s107 = sadd.s32 %s106, 1
    %s108 = scalar_select %p105, %s106, %s107
    %p111 = pneg %p105
    %p112 = scmp.eq.s32.totalorder %s18, 1
    %p113 = por %p111, %p112
    %p114 = scmp.ne.s32.totalorder %s106, %s109
    %p115 = scmp.eq.s32.totalorder %s18, 0
    %p116 = por %p114, %p115
    %p117 = scmp.ne.s32.totalorder %s106, %s109
    %p118 = scmp.eq.s32.totalorder %s23, 1
    %p119 = por %p117, %p118
    %p120 = scmp.ne.s32.totalorder %s109, %s110
    %p121 = scmp.eq.s32.totalorder %s23, 0
    %p122 = por %p120, %p121
    %p123 = scmp.ne.s32.totalorder %s109, %s110
    %p124 = scmp.eq.s32.totalorder %s24, 1
    %p125 = por %p123, %p124
    %p127 = scmp.ne.s32.totalorder %s110, %s126
    %p128 = scmp.eq.s32.totalorder %s24, 0
    %p129 = por %p127, %p128
    %s131 = sadd.s32 %s130, 1
    %p134 = scmp.eq.s32.totalorder %s18, 1
    %p135 = scmp.ne.s32.totalorder %s130, %s132
    %p136 = scmp.eq.s32.totalorder %s18, 0
    %p137 = por %p135, %p136
    %p138 = scmp.ne.s32.totalorder %s130, %s132
    %p139 = scmp.eq.s32.totalorder %s23, 1
    %p140 = por %p138, %p139
    %p141 = scmp.ne.s32.totalorder %s132, %s133
    %p142 = scmp.eq.s32.totalorder %s23, 0
    %p143 = por %p141, %p142
    %p144 = scmp.ne.s32.totalorder %s132, %s133
    %p145 = scmp.eq.s32.totalorder %s24, 1
    %p146 = por %p144, %p145
    %p148 = scmp.ne.s32.totalorder %s133, %s147
    %p149 = scmp.eq.s32.totalorder %s24, 0
    %p150 = por %p148, %p149
    %s152 = sadd.s32 %s151, 1
    %p155 = scmp.eq.s32.totalorder %s18, 1
    %p156 = scmp.ne.s32.totalorder %s151, %s153
    %p157 = scmp.eq.s32.totalorder %s18, 0
    %p158 = por %p156, %p157
    %p159 = scmp.ne.s32.totalorder %s151, %s153
    %p160 = scmp.eq.s32.totalorder %s23, 1
    %p161 = por %p159, %p160
    %p162 = scmp.ne.s32.totalorder %s153, %s154
    %p163 = scmp.eq.s32.totalorder %s23, 0
    %p164 = por %p162, %p163
    %p165 = scmp.ne.s32.totalorder %s153, %s154
    %p166 = scmp.eq.s32.totalorder %s24, 1
    %p167 = por %p165, %p166
    %p169 = scmp.ne.s32.totalorder %s154, %s168
    %p170 = scmp.eq.s32.totalorder %s24, 0
    %p171 = por %p169, %p170
    %s173 = sadd.s32 %s172, 1
    %p176 = scmp.eq.s32.totalorder %s18, 1
    %p177 = scmp.ne.s32.totalorder %s172, %s174
    %p178 = scmp.eq.s32.totalorder %s18, 0
    %p179 = por %p177, %p178
    %p180 = scmp.ne.s32.totalorder %s172, %s174
    %p181 = scmp.eq.s32.totalorder %s23, 1
    %p182 = por %p180, %p181
    %p183 = scmp.ne.s32.totalorder %s174, %s175
    %p184 = scmp.eq.s32.totalorder %s23, 0
    %p185 = por %p183, %p184
    %p186 = scmp.ne.s32.totalorder %s174, %s175
    %p187 = scmp.eq.s32.totalorder %s24, 1
    %p188 = por %p186, %p187
    %p190 = scmp.ne.s32.totalorder %s175, %s189
    %p191 = scmp.eq.s32.totalorder %s24, 0
    %p192 = por %p190, %p191
    %s194 = sadd.s32 %s193, 1
    %p197 = scmp.eq.s32.totalorder %s18, 1
    %p198 = scmp.ne.s32.totalorder %s193, %s195
    %p199 = scmp.eq.s32.totalorder %s18, 0
    %p200 = por %p198, %p199
    %p201 = scmp.ne.s32.totalorder %s193, %s195
    %p202 = scmp.eq.s32.totalorder %s23, 1
    %p203 = por %p201, %p202
    %p204 = scmp.ne.s32.totalorder %s195, %s196
    %p205 = scmp.eq.s32.totalorder %s23, 0
    %p206 = por %p204, %p205
    %p207 = scmp.ne.s32.totalorder %s195, %s196
    %p208 = scmp.eq.s32.totalorder %s24, 1
    %p209 = por %p207, %p208
    %p211 = scmp.ne.s32.totalorder %s196, %s210
    %p212 = scmp.eq.s32.totalorder %s24, 0
    %p213 = por %p211, %p212
    %s215 = sadd.s32 %s214, 1
    %p218 = scmp.eq.s32.totalorder %s18, 1
    %p219 = scmp.ne.s32.totalorder %s214, %s216
    %p220 = scmp.eq.s32.totalorder %s18, 0
    %p221 = por %p219, %p220
    %p222 = scmp.ne.s32.totalorder %s214, %s216
    %p223 = scmp.eq.s32.totalorder %s23, 1
    %p224 = por %p222, %p223
    %p225 = scmp.ne.s32.totalorder %s216, %s217
    %p226 = scmp.eq.s32.totalorder %s23, 0
    %p227 = por %p225, %p226
    %p228 = scmp.ne.s32.totalorder %s216, %s217
    %p229 = scmp.eq.s32.totalorder %s24, 1
    %p230 = por %p228, %p229
    %p232 = scmp.ne.s32.totalorder %s217, %s231
    %p233 = scmp.eq.s32.totalorder %s24, 0
    %p234 = por %p232, %p233
    %s236 = sadd.s32 %s235, 1
    %p239 = scmp.eq.s32.totalorder %s18, 1
    %p240 = scmp.ne.s32.totalorder %s235, %s237
    %p241 = scmp.eq.s32.totalorder %s18, 0
    %p242 = por %p240, %p241
    %p243 = scmp.ne.s32.totalorder %s235, %s237
    %p244 = scmp.eq.s32.totalorder %s23, 1
    %p245 = por %p243, %p244
    %p246 = scmp.ne.s32.totalorder %s237, %s238
    %p247 = scmp.eq.s32.totalorder %s23, 0
    %p248 = por %p246, %p247
    %p249 = scmp.ne.s32.totalorder %s237, %s238
    %p250 = scmp.eq.s32.totalorder %s24, 1
    %p251 = por %p249, %p250
    %p253 = scmp.ne.s32.totalorder %s238, %s252
    %p254 = scmp.eq.s32.totalorder %s24, 0
    %p255 = por %p253, %p254
    %s257 = sadd.s32 %s256, 1
    %p260 = scmp.eq.s32.totalorder %s18, 1
    %p261 = scmp.ne.s32.totalorder %s256, %s258
    %p262 = scmp.eq.s32.totalorder %s18, 0
    %p263 = por %p261, %p262
    %p264 = scmp.ne.s32.totalorder %s256, %s258
    %p265 = scmp.eq.s32.totalorder %s23, 1
    %p266 = por %p264, %p265
    %p267 = scmp.ne.s32.totalorder %s258, %s259
    %p268 = scmp.eq.s32.totalorder %s23, 0
    %p269 = por %p267, %p268
    %p270 = scmp.ne.s32.totalorder %s258, %s259
    %p271 = scmp.eq.s32.totalorder %s24, 1
    %p272 = por %p270, %p271
    %p274 = scmp.ne.s32.totalorder %s259, %s273
    %p275 = scmp.eq.s32.totalorder %s24, 0
    %p276 = por %p274, %p275
    %s278 = sadd.s32 %s277, 1
    %p281 = scmp.eq.s32.totalorder %s18, 1
    %p282 = scmp.ne.s32.totalorder %s277, %s279
    %p283 = scmp.eq.s32.totalorder %s18, 0
    %p284 = por %p282, %p283
    %p285 = scmp.ne.s32.totalorder %s277, %s279
    %p286 = scmp.eq.s32.totalorder %s23, 1
    %p287 = por %p285, %p286
    %p288 = scmp.ne.s32.totalorder %s279, %s280
    %p289 = scmp.eq.s32.totalorder %s23, 0
    %p290 = por %p288, %p289
    %p291 = scmp.ne.s32.totalorder %s279, %s280
    %p292 = scmp.eq.s32.totalorder %s24, 1
    %p293 = por %p291, %p292
    %p295 = scmp.ne.s32.totalorder %s280, %s294
    %p296 = scmp.eq.s32.totalorder %s24, 0
    %p297 = por %p295, %p296
    %s298 = ssub.s32 %s18, %s25
    %p299 = scmp.eq.s32.totalorder %s298, 0
    %s301 = sadd.s32 %s300, 1
    %s302 = scalar_select %p299, %s300, %s301
    %p305 = pneg %p299
    %p306 = scmp.eq.s32.totalorder %s18, 1
    %p307 = por %p305, %p306
    %p308 = scmp.ne.s32.totalorder %s300, %s303
    %p309 = scmp.eq.s32.totalorder %s18, 0
    %p310 = por %p308, %p309
    %p311 = scmp.ne.s32.totalorder %s300, %s303
    %p312 = scmp.eq.s32.totalorder %s23, 1
    %p313 = por %p311, %p312
    %p314 = scmp.ne.s32.totalorder %s303, %s304
    %p315 = scmp.eq.s32.totalorder %s23, 0
    %p316 = por %p314, %p315
    %p317 = scmp.ne.s32.totalorder %s303, %s304
    %p318 = scmp.eq.s32.totalorder %s24, 1
    %p319 = por %p317, %p318
    %p321 = scmp.ne.s32.totalorder %s304, %s320
    %p322 = scmp.eq.s32.totalorder %s24, 0
    %p323 = por %p321, %p322
    %p324 = scmp.le.s32.totalorder 1, %s18
    %p325 = scmp.lt.s32.totalorder %s18, 3
    %p326 = pnand %p324, %p325
    %p327 = pneg %p326
    // Predicated region
    $region9: #{vision_agent_attention.1} parent=5 // pred_check
      _
    $region10: #{vision_agent_attention.1} parent=5 // pred_check_branch
      %329 = sbr.rel (%p326) target = $region12
    $region11: #{vision_agent_attention.1} parent=5 // pred_region
      %s330 = ssub.s32 %s18, 1
      // Predicated region
      $region13: #{vision_agent_attention.1} parent=11 // pred_check
        %p331 = pneg %p143
      $region14: #{vision_agent_attention.1} parent=11 // pred_check_branch
        %333 = sbr.rel (%p331) target = $region16
      $region15: #{vision_agent_attention.1} parent=11 // pred_region
        _
      $region16: #{vision_agent_attention.1} parent=11 // pred_fallthru
        _
      // Predicated region
      $region17: #{vision_agent_attention.1} parent=11 // pred_check
        %p334 = pneg %p164
      $region18: #{vision_agent_attention.1} parent=11 // pred_check_branch
        %336 = sbr.rel (%p334) target = $region20
      $region19: #{vision_agent_attention.1} parent=11 // pred_region
        _
      $region20: #{vision_agent_attention.1} parent=11 // pred_fallthru
        _
      // Predicated region
      $region21: #{vision_agent_attention.1} parent=11 // pred_check
        %p337 = pneg %p185
      $region22: #{vision_agent_attention.1} parent=11 // pred_check_branch
        %339 = sbr.rel (%p337) target = $region24
      $region23: #{vision_agent_attention.1} parent=11 // pred_region
        _
      $region24: #{vision_agent_attention.1} parent=11 // pred_fallthru
        _
      // Predicated region
      $region25: #{vision_agent_attention.1} parent=11 // pred_check
        %p340 = pneg %p206
      $region26: #{vision_agent_attention.1} parent=11 // pred_check_branch
        %342 = sbr.rel (%p340) target = $region28
      $region27: #{vision_agent_attention.1} parent=11 // pred_region
        _
      $region28: #{vision_agent_attention.1} parent=11 // pred_fallthru
        _
      // Predicated region
      $region29: #{vision_agent_attention.1} parent=11 // pred_check
        %p343 = pneg %p227
      $region30: #{vision_agent_attention.1} parent=11 // pred_check_branch
        %345 = sbr.rel (%p343) target = $region32
      $region31: #{vision_agent_attention.1} parent=11 // pred_region
        _
      $region32: #{vision_agent_attention.1} parent=11 // pred_fallthru
        _
      // Predicated region
      $region33: #{vision_agent_attention.1} parent=11 // pred_check
        %p346 = pneg %p248
      $region34: #{vision_agent_attention.1} parent=11 // pred_check_branch
        %348 = sbr.rel (%p346) target = $region36
      $region35: #{vision_agent_attention.1} parent=11 // pred_region
        _
      $region36: #{vision_agent_attention.1} parent=11 // pred_fallthru
        _
      // Predicated region
      $region37: #{vision_agent_attention.1} parent=11 // pred_check
        %p349 = pneg %p269
      $region38: #{vision_agent_attention.1} parent=11 // pred_check_branch
        %351 = sbr.rel (%p349) target = $region40
      $region39: #{vision_agent_attention.1} parent=11 // pred_region
        _
      $region40: #{vision_agent_attention.1} parent=11 // pred_fallthru
        _
      // Predicated region
      $region41: #{vision_agent_attention.1} parent=11 // pred_check
        %p352 = pneg %p290
      $region42: #{vision_agent_attention.1} parent=11 // pred_check_branch
        %354 = sbr.rel (%p352) target = $region44
      $region43: #{vision_agent_attention.1} parent=11 // pred_region
        _
      $region44: #{vision_agent_attention.1} parent=11 // pred_fallthru
        _
    $region12: #{vision_agent_attention.1} parent=5 // pred_fallthru
      _
    %p355 = scmp.lt.s32.totalorder %s18, 2
    // Predicated region
    $region45: #{vision_agent_attention.1} parent=5 // pred_check
      %p356 = pneg %p355
    $region46: #{vision_agent_attention.1} parent=5 // pred_check_branch
      %358 = sbr.rel (%p356) target = $region48
    $region47: #{vision_agent_attention.1} parent=5 // pred_region
      // Predicated region
      $region49: #{vision_agent_attention.1} parent=47 // pred_check
        %p359 = pneg %p38
      $region50: #{vision_agent_attention.1} parent=47 // pred_check_branch
        %361 = sbr.rel (%p359) target = $region52
      $region51: #{vision_agent_attention.1} parent=47 // pred_region
        %p362 = scmp.lt.s32.totalorder %s18, 1
        %s363 = scalar_select %p362, %s18, 1
        %s364 = smul.addr %s363, 2
        %s365 = smul.addr %s364, 8
        %s366 = scalar_lea.vmem %s0, %s365
      $region52: #{vision_agent_attention.1} parent=47 // pred_fallthru
        _
      // Predicated region
      $region53: #{vision_agent_attention.1} parent=47 // pred_check
        %p367 = pneg %p64
      $region54: #{vision_agent_attention.1} parent=47 // pred_check_branch
        %369 = sbr.rel (%p367) target = $region56
      $region55: #{vision_agent_attention.1} parent=47 // pred_region
        %p370 = scmp.lt.s32.totalorder %s18, 1
        %s371 = scalar_select %p370, %s18, 1
        %s372 = smul.addr %s371, 2
        %s373 = smul.addr %s372, 8
        %s374 = scalar_lea.vmem %s1, %s373
      $region56: #{vision_agent_attention.1} parent=47 // pred_fallthru
        _
      // Predicated region
      $region57: #{vision_agent_attention.1} parent=47 // pred_check
        %p375 = pneg %p90
      $region58: #{vision_agent_attention.1} parent=47 // pred_check_branch
        %377 = sbr.rel (%p375) target = $region60
      $region59: #{vision_agent_attention.1} parent=47 // pred_region
        %p378 = scmp.lt.s32.totalorder %s18, 1
        %s379 = scalar_select %p378, %s18, 1
        %s380 = smul.addr %s379, 2
        %s381 = smul.addr %s380, 8
        %s382 = scalar_lea.vmem %s2, %s381
      $region60: #{vision_agent_attention.1} parent=47 // pred_fallthru
        _
      // Predicated region
      $region61: #{vision_agent_attention.1} parent=47 // pred_check
        %p383 = pneg %p116
      $region62: #{vision_agent_attention.1} parent=47 // pred_check_branch
        %385 = sbr.rel (%p383) target = $region64
      $region63: #{vision_agent_attention.1} parent=47 // pred_region
        %p386 = scmp.lt.s32.totalorder %s18, 1
        %s387 = scalar_select %p386, %s18, 1
        %s388 = smul.addr %s387, 2
        %s389 = smul.addr %s388, 8
        %s390 = scalar_lea.vmem %s3, %s389
      $region64: #{vision_agent_attention.1} parent=47 // pred_fallthru
        _
    $region48: #{vision_agent_attention.1} parent=5 // pred_fallthru
      _
    %p391 = scmp.le.s32.totalorder 1, %s18
    %p392 = scmp.lt.s32.totalorder %s18, 3
    %p393 = pnand %p391, %p392
    %p394 = pneg %p393
    // Predicated region
    $region65: #{vision_agent_attention.1} parent=5 // pred_check
      _
    $region66: #{vision_agent_attention.1} parent=5 // pred_check_branch
      %396 = sbr.rel (%p393) target = $region68
    $region67: #{vision_agent_attention.1} parent=5 // pred_region
      %s397 = ssub.s32 %s18, 1
      %p398 = scmp.lt.s32.totalorder %s23, 1
      %s399 = scalar_select %p398, %s23, 1
      %s400 = smul.addr %s399, 2
      %s401 = smul.addr %s400, 8
      %s402 = scalar_lea.vmem %s0, %s401
      %p403 = pneg %p44
      %p404 = pneg %p41
      %p405 = scmp.lt.s32.totalorder %s23, 1
      %s406 = scalar_select %p405, %s23, 1
      %s407 = smul.addr %s406, 2
      %s408 = smul.addr %s407, 8
      %s409 = scalar_lea.vmem %s1, %s408
      %p410 = pneg %p70
      %p411 = pneg %p67
      %p412 = scmp.lt.s32.totalorder %s23, 1
      %s413 = scalar_select %p412, %s23, 1
      %s414 = smul.addr %s413, 2
      %s415 = smul.addr %s414, 8
      %s416 = scalar_lea.vmem %s2, %s415
      %p417 = pneg %p96
      %p418 = pneg %p93
      %p419 = scmp.lt.s32.totalorder %s23, 1
      %s420 = scalar_select %p419, %s23, 1
      %s421 = smul.addr %s420, 2
      %s422 = smul.addr %s421, 8
      %s423 = scalar_lea.vmem %s3, %s422
      %p424 = pneg %p122
      %p425 = pneg %p119
      %p426 = pneg %p143
      %p427 = pneg %p140
      %p428 = pneg %p164
      %p429 = pneg %p161
      %p430 = pneg %p185
      %p431 = pneg %p182
      %p432 = pneg %p206
      %p433 = pneg %p203
      %p434 = pneg %p227
      %p435 = pneg %p224
      %p436 = pneg %p248
      %p437 = pneg %p245
      %p438 = pneg %p269
      %p439 = pneg %p266
      %p440 = pneg %p290
      %p441 = pneg %p287
      %p442 = pneg %p316
      %p443 = pneg %p313
      %p444 = scmp.lt.s32.totalorder %s23, 1
      %s445 = scalar_select %p444, %s23, 1
      %s446 = smul.addr %s445, 2
      %s447 = smul.addr %s446, 8
      %s448 = scalar_lea.vmem %s12, %s447
      %p449 = scmp.lt.s32.totalorder %s23, 1
      %s450 = scalar_select %p449, %s23, 1
      %s451 = smul.addr %s450, 2
      %s452 = smul.addr %s451, 8
      %s453 = scalar_lea.vmem %s0, %s452
      %p454 = scmp.lt.s32.totalorder %s23, 1
      %s455 = scalar_select %p454, %s23, 1
      %s456 = smul.addr %s455, 2
      %s457 = smul.addr %s456, 8
      %s458 = scalar_lea.vmem %s1, %s457
      %p459 = scmp.lt.s32.totalorder %s23, 1
      %s460 = scalar_select %p459, %s23, 1
      %s461 = smul.addr %s460, 2
      %s462 = smul.addr %s461, 8
      %s463 = scalar_lea.vmem %s2, %s462
      %p464 = scmp.lt.s32.totalorder %s23, 1
      %s465 = scalar_select %p464, %s23, 1
      %s466 = smul.addr %s465, 2
      %s467 = smul.addr %s466, 8
      %s468 = scalar_lea.vmem %s3, %s467
      %p469 = scmp.lt.s32.totalorder %s23, 1
      %s470 = scalar_select %p469, %s23, 1
      %s471 = smul.addr %s470, 2
      %s472 = smul.addr %s471, 8
      %s473 = scalar_lea.vmem %s12, %s472
      %v474 = vld [vmem:[%s453] sm:$0xff]
      %v475 = vld [vmem:[%s453 + $0x8] sm:$0xff]
      %v476 = vld [vmem:[%s4] sm:$0xff]
      %v477 = vld [vmem:[%s4 + $0x8] sm:$0xff]
      %v478 = vld [vmem:[%s4 + $0x10] sm:$0xff]
      %v479 = vld [vmem:[%s4 + $0x18] sm:$0xff]
      %v480 = vld [vmem:[%s4 + $0x20] sm:$0xff]
      %v481 = vld [vmem:[%s4 + $0x28] sm:$0xff]
      %v482 = vld [vmem:[%s4 + $0x30] sm:$0xff]
      %v483 = vld [vmem:[%s4 + $0x38] sm:$0xff]
      %v484 = vld [vmem:[%s8] sm:$0xff]
      %v485 = vld [vmem:[%s8 + $0x8] sm:$0xff]
      %vm486 = vcmask 523264
      %v488 = vsel %vm486, %v474, 0
      %v491 = vsel %vm486, %v475, 0
      %493 = vmatpush.msra.mxu0 0.0
      %494 = vmatpush.msra.mxu0 0.0
      %495 = vmatpush.msra.mxu0 0.0
      %496 = vmatpush.msra.mxu0 0.0
      %497 = vmatpush.msra.mxu0 0.0
      %498 = vmatpush.msra.mxu0 0.0
      %499 = vmatpush.msra.mxu0 0.0
      %500 = vmatpush.msra.mxu0 0.0
      %501 = vmatpush.msra.mxu0 %v483
      %502 = vmatpush.msra.mxu0 %v482
      %503 = vmatpush.msra.mxu0 %v481
      %504 = vmatpush.msra.mxu0 %v480
      %505 = vmatpush.msra.mxu0 %v479
      %506 = vmatpush.msra.mxu0 %v478
      %507 = vmatpush.msra.mxu0 %v477
      %508 = vmatpush.msra.mxu0 %v476
      %509 = vmatmul.f32.gmra.mxu0 %v488
      %v510 = vpop.f32.mrf.mxu0
      %v511 = vadd.f32 %v484, %v510
      %512 = vmatmul.f32.gmra.mxu0 %v491
      %v513 = vpop.f32.mrf.mxu0
      %v514 = vadd.f32 %v485, %v513
      %515 = vdwg.mxu0
      %v516 = vld [vmem:[%s458] sm:$0xff]
      %v517 = vld [vmem:[%s458 + $0x8] sm:$0xff]
      %v518 = vld [vmem:[%s5] sm:$0xff]
      %v519 = vld [vmem:[%s5 + $0x8] sm:$0xff]
      %v520 = vld [vmem:[%s5 + $0x10] sm:$0xff]
      %v521 = vld [vmem:[%s5 + $0x18] sm:$0xff]
      %v522 = vld [vmem:[%s5 + $0x20] sm:$0xff]
      %v523 = vld [vmem:[%s5 + $0x28] sm:$0xff]
      %v524 = vld [vmem:[%s5 + $0x30] sm:$0xff]
      %v525 = vld [vmem:[%s5 + $0x38] sm:$0xff]
      %v526 = vld [vmem:[%s5 + $0x40] sm:$0xff]
      %v527 = vld [vmem:[%s5 + $0x48] sm:$0xff]
      %v528 = vld [vmem:[%s5 + $0x50] sm:$0xff]
      %v529 = vld [vmem:[%s5 + $0x58] sm:$0xff]
      %v530 = vld [vmem:[%s9] sm:$0xff]
      %v531 = vld [vmem:[%s9 + $0x8] sm:$0xff]
      %vm532 = vcmask 785408
      %v534 = vsel %vm532, %v516, 0
      %v537 = vsel %vm532, %v517, 0
      %539 = vmatpush.msra.mxu0 0.0
      %540 = vmatpush.msra.mxu0 0.0
      %541 = vmatpush.msra.mxu0 0.0
      %542 = vmatpush.msra.mxu0 0.0
      %543 = vmatpush.msra.mxu0 %v529
      %544 = vmatpush.msra.mxu0 %v528
      %545 = vmatpush.msra.mxu0 %v527
      %546 = vmatpush.msra.mxu0 %v526
      %547 = vmatpush.msra.mxu0 %v525
      %548 = vmatpush.msra.mxu0 %v524
      %549 = vmatpush.msra.mxu0 %v523
      %550 = vmatpush.msra.mxu0 %v522
      %551 = vmatpush.msra.mxu0 %v521
      %552 = vmatpush.msra.mxu0 %v520
      %553 = vmatpush.msra.mxu0 %v519
      %554 = vmatpush.msra.mxu0 %v518
      %555 = vmatmul.f32.gmra.mxu0 %v534
      %v556 = vpop.f32.mrf.mxu0
      %v557 = vadd.f32 %v530, %v556
      %558 = vmatmul.f32.gmra.mxu0 %v537
      %v559 = vpop.f32.mrf.mxu0
      %v560 = vadd.f32 %v531, %v559
      %561 = vdwg.mxu0
      %v562 = vld [vmem:[%s463] sm:$0xff]
      %v563 = vld [vmem:[%s463 + $0x8] sm:$0xff]
      %v564 = vld [vmem:[%s6] sm:$0xff]
      %v565 = vld [vmem:[%s6 + $0x8] sm:$0xff]
      %v566 = vld [vmem:[%s6 + $0x10] sm:$0xff]
      %v567 = vld [vmem:[%s6 + $0x18] sm:$0xff]
      %v568 = vld [vmem:[%s6 + $0x20] sm:$0xff]
      %v569 = vld [vmem:[%s6 + $0x28] sm:$0xff]
      %v570 = vld [vmem:[%s6 + $0x30] sm:$0xff]
      %v571 = vld [vmem:[%s6 + $0x38] sm:$0xff]
      %v572 = vld [vmem:[%s6 + $0x40] sm:$0xff]
      %v573 = vld [vmem:[%s6 + $0x48] sm:$0xff]
      %v574 = vld [vmem:[%s6 + $0x50] sm:$0xff]
      %v575 = vld [vmem:[%s6 + $0x58] sm:$0xff]
      %v576 = vld [vmem:[%s6 + $0x60] sm:$0xff]
      %v577 = vld [vmem:[%s6 + $0x68] sm:$0xff]
      %v578 = vld [vmem:[%s6 + $0x70] sm:$0xff]
      %v579 = vld [vmem:[%s6 + $0x78] sm:$0xff]
      %v580 = vld [vmem:[%s10] sm:$0xff]
      %v581 = vld [vmem:[%s10 + $0x8] sm:$0xff]
      %582 = vmatpush.msra.mxu0 %v579
      %583 = vmatpush.msra.mxu0 %v578
      %584 = vmatpush.msra.mxu0 %v577
      %585 = vmatpush.msra.mxu0 %v576
      %586 = vmatpush.msra.mxu0 %v575
      %587 = vmatpush.msra.mxu0 %v574
      %588 = vmatpush.msra.mxu0 %v573
      %589 = vmatpush.msra.mxu0 %v572
      %590 = vmatpush.msra.mxu0 %v571
      %591 = vmatpush.msra.mxu0 %v570
      %592 = vmatpush.msra.mxu0 %v569
      %593 = vmatpush.msra.mxu0 %v568
      %594 = vmatpush.msra.mxu0 %v567
      %595 = vmatpush.msra.mxu0 %v566
      %596 = vmatpush.msra.mxu0 %v565
      %597 = vmatpush.msra.mxu0 %v564
      %598 = vmatmul.f32.gmra.mxu0 %v562
      %v599 = vpop.f32.mrf.mxu0
      %v600 = vadd.f32 %v580, %v599
      %601 = vmatmul.f32.gmra.mxu0 %v563
      %v602 = vpop.f32.mrf.mxu0
      %v603 = vadd.f32 %v581, %v602
      %604 = vdwg.mxu0
      %v605 = vld [vmem:[%s468] sm:$0xff]
      %v606 = vld [vmem:[%s468 + $0x8] sm:$0xff]
      %v607 = vld [vmem:[%s7] sm:$0xff]
      %v608 = vld [vmem:[%s7 + $0x8] sm:$0xff]
      %v609 = vld [vmem:[%s7 + $0x10] sm:$0xff]
      %v610 = vld [vmem:[%s7 + $0x18] sm:$0xff]
      %v611 = vld [vmem:[%s7 + $0x20] sm:$0xff]
      %v612 = vld [vmem:[%s7 + $0x28] sm:$0xff]
      %v613 = vld [vmem:[%s7 + $0x30] sm:$0xff]
      %v614 = vld [vmem:[%s7 + $0x38] sm:$0xff]
      %v615 = vld [vmem:[%s11] sm:$0xff]
      %v616 = vld [vmem:[%s11 + $0x8] sm:$0xff]
      %v618 = vsel %vm486, %v605, 0
      %v621 = vsel %vm486, %v606, 0
      %623 = vmatpush.msra.mxu0 0.0
      %624 = vmatpush.msra.mxu0 0.0
      %625 = vmatpush.msra.mxu0 0.0
      %626 = vmatpush.msra.mxu0 0.0
      %627 = vmatpush.msra.mxu0 0.0
      %628 = vmatpush.msra.mxu0 0.0
      %629 = vmatpush.msra.mxu0 0.0
      %630 = vmatpush.msra.mxu0 0.0
      %631 = vmatpush.msra.mxu0 %v614
      %632 = vmatpush.msra.mxu0 %v613
      %633 = vmatpush.msra.mxu0 %v612
      %634 = vmatpush.msra.mxu0 %v611
      %635 = vmatpush.msra.mxu0 %v610
      %636 = vmatpush.msra.mxu0 %v609
      %637 = vmatpush.msra.mxu0 %v608
      %638 = vmatpush.msra.mxu0 %v607
      %639 = vmatmul.f32.gmra.mxu0 %v618
      %v640 = vpop.f32.mrf.mxu0
      %v641 = vadd.f32 %v615, %v640
      %642 = vmatmul.f32.gmra.mxu0 %v621
      %v643 = vpop.f32.mrf.mxu0
      %v644 = vadd.f32 %v616, %v643
      %645 = vdwg.mxu0
      %v646 = vlaneseq
      %v647 = vand.u32 %v646, 127
      %vm648 = vcmp.ge.s32.totalorder %v647, 0
      %vm649 = vcmp.lt.s32.totalorder %v647, 8
      %vm650 = vmand %vm648, %vm649
      %v651 = vsel %vm650, 1, 0
      %v652 = vcvt.s32.f32 %v651
      %v653 = vmul.f32 %v511, %v652
      %v654 = vmul.f32 %v514, %v652
      %vm655 = vcmask 130048
      %v657 = vsel %vm655, %v653, 0
      %v660 = vsel %vm655, %v654, 0
      %v663 = vsel %vm655, %v641, 0
      %v666 = vsel %vm655, %v644, 0
      %668 = vmatpush.xpose.msra.mxu0 0.0
      %669 = vmatpush.xpose.msra.mxu0 0.0
      %670 = vmatpush.xpose.msra.mxu0 0.0
      %671 = vmatpush.xpose.msra.mxu0 0.0
      %672 = vmatpush.xpose.msra.mxu0 0.0
      %673 = vmatpush.xpose.msra.mxu0 0.0
      %674 = vmatpush.xpose.msra.mxu0 0.0
      %675 = vmatpush.xpose.msra.mxu0 0.0
      %676 = vmatpush.xpose.msra.mxu0 0.0
      %677 = vmatpush.xpose.msra.mxu0 0.0
      %678 = vmatpush.xpose.msra.mxu0 0.0
      %679 = vmatpush.xpose.msra.mxu0 0.0
      %680 = vmatpush.xpose.msra.mxu0 0.0
      %681 = vmatpush.xpose.msra.mxu0 0.0
      %682 = vmatpush.xpose.msra.mxu0 %v666
      %683 = vmatpush.xpose.msra.mxu0 %v663
      %684 = vmatmul.f32.gmra.mxu0 %v657
      %v685 = vpop.f32.mrf.mxu0
      %v686 = vadd.f32 0.0, %v685
      %687 = vmatmul.f32.gmra.mxu0 %v660
      %v688 = vpop.f32.mrf.mxu0
      %v689 = vadd.f32 0.0, %v688
      %690 = vdwg.mxu0
      %v691 = vmul.f32 %v686, 0.35355338
      %v692 = vmul.f32 %v689, 0.35355338
      %v693 = vsel %vm655, %v691, -inf
      %694 = vmax.xlane.f32.xlu0 %v693
      %v695 = vpop.xlane.xlu0 %694
      %v696 = vsel %vm655, %v692, -inf
      %697 = vmax.xlane.f32.xlu0 %v696
      %v698 = vpop.xlane.xlu0 %697
      %v699 = vsub.f32 %v691, %v695
      %v700 = vsub.f32 %v692, %v698
      %v701 = vmul.f32 %v699, 1.442695
      %v702 = vpow.pop %v701
      %v703 = vmul.f32 %v700, 1.442695
      %v704 = vpow.pop %v703
      %v705 = vsel %vm655, %v702, 0.0
      %706 = vadd.xlane.f32.xlu0 %v705
      %v707 = vpop.xlane.xlu0 %706
      %v708 = vsel %vm655, %v704, 0.0
      %709 = vadd.xlane.f32.xlu0 %v708
      %v710 = vpop.xlane.xlu0 %709
      %v711 = vrcp.pop %v707
      %v712 = vrcp.pop %v710
      %v713 = vmul.f32 %v707, %v711
      %v714 = vmul.f32 %v710, %v712
      %v715 = vsub.f32 2.0, %v713
      %v716 = vsub.f32 2.0, %v714
      %v717 = vmul.f32 %v711, %v715
      %v718 = vmul.f32 %v712, %v716
      %v719 = vmul.f32 %v702, %v717
      %v720 = vmul.f32 %v704, %v718
      %v721 = vmul.f32 %v641, %v652
      %v722 = vmul.f32 %v644, %v652
      %v724 = vsel %vm655, %v721, 0
      %v727 = vsel %vm655, %v722, 0
      %v730 = vsel %vm655, %v557, 0
      %v733 = vsel %vm655, %v560, 0
      %735 = vmatpush.xpose.msra.mxu0 0.0
      %736 = vmatpush.xpose.msra.mxu0 0.0
      %737 = vmatpush.xpose.msra.mxu0 0.0
      %738 = vmatpush.xpose.msra.mxu0 0.0
      %739 = vmatpush.xpose.msra.mxu0 0.0
      %740 = vmatpush.xpose.msra.mxu0 0.0
      %741 = vmatpush.xpose.msra.mxu0 0.0
      %742 = vmatpush.xpose.msra.mxu0 0.0
      %743 = vmatpush.xpose.msra.mxu0 0.0
      %744 = vmatpush.xpose.msra.mxu0 0.0
      %745 = vmatpush.xpose.msra.mxu0 0.0
      %746 = vmatpush.xpose.msra.mxu0 0.0
      %747 = vmatpush.xpose.msra.mxu0 0.0
      %748 = vmatpush.xpose.msra.mxu0 0.0
      %749 = vmatpush.xpose.msra.mxu0 %v733
      %750 = vmatpush.xpose.msra.mxu0 %v730
      %751 = vmatmul.f32.gmra.mxu0 %v724
      %v752 = vpop.f32.mrf.mxu0
      %v753 = vadd.f32 0.0, %v752
      %754 = vmatmul.f32.gmra.mxu0 %v727
      %v755 = vpop.f32.mrf.mxu0
      %v756 = vadd.f32 0.0, %v755
      %757 = vdwg.mxu0
      %v758 = vmul.f32 %v753, 0.35355338
      %v759 = vmul.f32 %v756, 0.35355338
      %v760 = vsel %vm655, %v758, -inf
      %761 = vmax.xlane.f32.xlu0 %v760
      %v762 = vpop.xlane.xlu0 %761
      %v763 = vsel %vm655, %v759, -inf
      %764 = vmax.xlane.f32.xlu0 %v763
      %v765 = vpop.xlane.xlu0 %764
      %v766 = vsub.f32 %v758, %v762
      %v767 = vsub.f32 %v759, %v765
      %v768 = vmul.f32 %v766, 1.442695
      %v769 = vpow.pop %v768
      %v770 = vmul.f32 %v767, 1.442695
      %v771 = vpow.pop %v770
      %v772 = vsel %vm655, %v769, 0.0
      %773 = vadd.xlane.f32.xlu0 %v772
      %v774 = vpop.xlane.xlu0 %773
      %v775 = vsel %vm655, %v771, 0.0
      %776 = vadd.xlane.f32.xlu0 %v775
      %v777 = vpop.xlane.xlu0 %776
      %v778 = vrcp.pop %v774
      %v779 = vrcp.pop %v777
      %v780 = vmul.f32 %v774, %v778
      %v781 = vmul.f32 %v777, %v779
      %v782 = vsub.f32 2.0, %v780
      %v783 = vsub.f32 2.0, %v781
      %v784 = vmul.f32 %v778, %v782
      %v785 = vmul.f32 %v779, %v783
      %v786 = vmul.f32 %v769, %v784
      %v787 = vmul.f32 %v771, %v785
      %v788 = vmul.f32 %v600, %v652
      %v789 = vmul.f32 %v603, %v652
      %v791 = vsel %vm655, %v786, 0
      %v794 = vsel %vm655, %v787, 0
      %796 = vmatpush.msra.mxu0 0.0
      %797 = vmatpush.msra.mxu0 0.0
      %798 = vmatpush.msra.mxu0 0.0
      %799 = vmatpush.msra.mxu0 0.0
      %800 = vmatpush.msra.mxu0 0.0
      %801 = vmatpush.msra.mxu0 0.0
      %802 = vmatpush.msra.mxu0 0.0
      %803 = vmatpush.msra.mxu0 0.0
      %804 = vmatpush.msra.mxu0 0.0
      %805 = vmatpush.msra.mxu0 0.0
      %806 = vmatpush.msra.mxu0 0.0
      %807 = vmatpush.msra.mxu0 0.0
      %808 = vmatpush.msra.mxu0 0.0
      %809 = vmatpush.msra.mxu0 0.0
      %810 = vmatpush.msra.mxu0 %v789
      %811 = vmatpush.msra.mxu0 %v788
      %812 = vmatmul.f32.gmra.mxu0 %v791
      %v813 = vpop.f32.mrf.mxu0
      %v814 = vadd.f32 0.0, %v813
      %815 = vmatmul.f32.gmra.mxu0 %v794
      %v816 = vpop.f32.mrf.mxu0
      %v817 = vadd.f32 0.0, %v816
      %818 = vdwg.mxu0
      %vm819 = vcmp.ge.s32.totalorder %v647, 8
      %vm820 = vcmp.lt.s32.totalorder %v647, 16
      %vm821 = vmand %vm819, %vm820
      %v822 = vsel %vm821, 1, 0
      %v823 = vcvt.s32.f32 %v822
      %v824 = vmul.f32 %v511, %v823
      %v825 = vmul.f32 %v514, %v823
      %v827 = vsel %vm655, %v824, 0
      %v830 = vsel %vm655, %v825, 0
      %832 = vmatpush.xpose.msra.mxu0 0.0
      %833 = vmatpush.xpose.msra.mxu0 0.0
      %834 = vmatpush.xpose.msra.mxu0 0.0
      %835 = vmatpush.xpose.msra.mxu0 0.0
      %836 = vmatpush.xpose.msra.mxu0 0.0
      %837 = vmatpush.xpose.msra.mxu0 0.0
      %838 = vmatpush.xpose.msra.mxu0 0.0
      %839 = vmatpush.xpose.msra.mxu0 0.0
      %840 = vmatpush.xpose.msra.mxu0 0.0
      %841 = vmatpush.xpose.msra.mxu0 0.0
      %842 = vmatpush.xpose.msra.mxu0 0.0
      %843 = vmatpush.xpose.msra.mxu0 0.0
      %844 = vmatpush.xpose.msra.mxu0 0.0
      %845 = vmatpush.xpose.msra.mxu0 0.0
      %846 = vmatpush.xpose.msra.mxu0 %v666
      %847 = vmatpush.xpose.msra.mxu0 %v663
      %848 = vmatmul.f32.gmra.mxu0 %v827
      %v849 = vpop.f32.mrf.mxu0
      %v850 = vadd.f32 0.0, %v849
      %851 = vmatmul.f32.gmra.mxu0 %v830
      %v852 = vpop.f32.mrf.mxu0
      %v853 = vadd.f32 0.0, %v852
      %854 = vdwg.mxu0
      %v855 = vmul.f32 %v850, 0.35355338
      %v856 = vmul.f32 %v853, 0.35355338
      %v857 = vsel %vm655, %v855, -inf
      %858 = vmax.xlane.f32.xlu0 %v857
      %v859 = vpop.xlane.xlu0 %858
      %v860 = vsel %vm655, %v856, -inf
      %861 = vmax.xlane.f32.xlu0 %v860
      %v862 = vpop.xlane.xlu0 %861
      %v863 = vsub.f32 %v855, %v859
      %v864 = vsub.f32 %v856, %v862
      %v865 = vmul.f32 %v863, 1.442695
      %v866 = vpow.pop %v865
      %v867 = vmul.f32 %v864, 1.442695
      %v868 = vpow.pop %v867
      %v869 = vsel %vm655, %v866, 0.0
      %870 = vadd.xlane.f32.xlu0 %v869
      %v871 = vpop.xlane.xlu0 %870
      %v872 = vsel %vm655, %v868, 0.0
      %873 = vadd.xlane.f32.xlu0 %v872
      %v874 = vpop.xlane.xlu0 %873
      %v875 = vrcp.pop %v871
      %v876 = vrcp.pop %v874
      %v877 = vmul.f32 %v871, %v875
      %v878 = vmul.f32 %v874, %v876
      %v879 = vsub.f32 2.0, %v877
      %v880 = vsub.f32 2.0, %v878
      %v881 = vmul.f32 %v875, %v879
      %v882 = vmul.f32 %v876, %v880
      %v883 = vmul.f32 %v866, %v881
      %v884 = vmul.f32 %v868, %v882
      %v885 = vmul.f32 %v641, %v823
      %v886 = vmul.f32 %v644, %v823
      %v888 = vsel %vm655, %v885, 0
      %v891 = vsel %vm655, %v886, 0
      %893 = vmatpush.xpose.msra.mxu0 0.0
      %894 = vmatpush.xpose.msra.mxu0 0.0
      %895 = vmatpush.xpose.msra.mxu0 0.0
      %896 = vmatpush.xpose.msra.mxu0 0.0
      %897 = vmatpush.xpose.msra.mxu0 0.0
      %898 = vmatpush.xpose.msra.mxu0 0.0
      %899 = vmatpush.xpose.msra.mxu0 0.0
      %900 = vmatpush.xpose.msra.mxu0 0.0
      %901 = vmatpush.xpose.msra.mxu0 0.0
      %902 = vmatpush.xpose.msra.mxu0 0.0
      %903 = vmatpush.xpose.msra.mxu0 0.0
      %904 = vmatpush.xpose.msra.mxu0 0.0
      %905 = vmatpush.xpose.msra.mxu0 0.0
      %906 = vmatpush.xpose.msra.mxu0 0.0
      %907 = vmatpush.xpose.msra.mxu0 %v733
      %908 = vmatpush.xpose.msra.mxu0 %v730
      %909 = vmatmul.f32.gmra.mxu0 %v888
      %v910 = vpop.f32.mrf.mxu0
      %v911 = vadd.f32 0.0, %v910
      %912 = vmatmul.f32.gmra.mxu0 %v891
      %v913 = vpop.f32.mrf.mxu0
      %v914 = vadd.f32 0.0, %v913
      %915 = vdwg.mxu0
      %v916 = vmul.f32 %v911, 0.35355338
      %v917 = vmul.f32 %v914, 0.35355338
      %v918 = vsel %vm655, %v916, -inf
      %919 = vmax.xlane.f32.xlu0 %v918
      %v920 = vpop.xlane.xlu0 %919
      %v921 = vsel %vm655, %v917, -inf
      %922 = vmax.xlane.f32.xlu0 %v921
      %v923 = vpop.xlane.xlu0 %922
      %v924 = vsub.f32 %v916, %v920
      %v925 = vsub.f32 %v917, %v923
      %v926 = vmul.f32 %v924, 1.442695
      %v927 = vpow.pop %v926
      %v928 = vmul.f32 %v925, 1.442695
      %v929 = vpow.pop %v928
      %v930 = vsel %vm655, %v927, 0.0
      %931 = vadd.xlane.f32.xlu0 %v930
      %v932 = vpop.xlane.xlu0 %931
      %v933 = vsel %vm655, %v929, 0.0
      %934 = vadd.xlane.f32.xlu0 %v933
      %v935 = vpop.xlane.xlu0 %934
      %v936 = vrcp.pop %v932
      %v937 = vrcp.pop %v935
      %v938 = vmul.f32 %v932, %v936
      %v939 = vmul.f32 %v935, %v937
      %v940 = vsub.f32 2.0, %v938
      %v941 = vsub.f32 2.0, %v939
      %v942 = vmul.f32 %v936, %v940
      %v943 = vmul.f32 %v937, %v941
      %v944 = vmul.f32 %v927, %v942
      %v945 = vmul.f32 %v929, %v943
      %v946 = vmul.f32 %v600, %v823
      %v947 = vmul.f32 %v603, %v823
      %v949 = vsel %vm655, %v944, 0
      %v952 = vsel %vm655, %v945, 0
      %954 = vmatpush.msra.mxu0 0.0
      %955 = vmatpush.msra.mxu0 0.0
      %956 = vmatpush.msra.mxu0 0.0
      %957 = vmatpush.msra.mxu0 0.0
      %958 = vmatpush.msra.mxu0 0.0
      %959 = vmatpush.msra.mxu0 0.0
      %960 = vmatpush.msra.mxu0 0.0
      %961 = vmatpush.msra.mxu0 0.0
      %962 = vmatpush.msra.mxu0 0.0
      %963 = vmatpush.msra.mxu0 0.0
      %964 = vmatpush.msra.mxu0 0.0
      %965 = vmatpush.msra.mxu0 0.0
      %966 = vmatpush.msra.mxu0 0.0
      %967 = vmatpush.msra.mxu0 0.0
      %968 = vmatpush.msra.mxu0 %v947
      %969 = vmatpush.msra.mxu0 %v946
      %970 = vmatmul.f32.gmra.mxu0 %v949
      %v971 = vpop.f32.mrf.mxu0
      %v972 = vadd.f32 0.0, %v971
      %973 = vmatmul.f32.gmra.mxu0 %v952
      %v974 = vpop.f32.mrf.mxu0
      %v975 = vadd.f32 0.0, %v974
      %976 = vdwg.mxu0
      %v978 = vsel %vm655, %v883, 0
      %v981 = vsel %vm655, %v884, 0
      %983 = vmatpush.msra.mxu0 0.0
      %984 = vmatpush.msra.mxu0 0.0
      %985 = vmatpush.msra.mxu0 0.0
      %986 = vmatpush.msra.mxu0 0.0
      %987 = vmatpush.msra.mxu0 0.0
      %988 = vmatpush.msra.mxu0 0.0
      %989 = vmatpush.msra.mxu0 0.0
      %990 = vmatpush.msra.mxu0 0.0
      %991 = vmatpush.msra.mxu0 0.0
      %992 = vmatpush.msra.mxu0 0.0
      %993 = vmatpush.msra.mxu0 0.0
      %994 = vmatpush.msra.mxu0 0.0
      %995 = vmatpush.msra.mxu0 0.0
      %996 = vmatpush.msra.mxu0 0.0
      %997 = vmatpush.msra.mxu0 %v975
      %998 = vmatpush.msra.mxu0 %v972
      %999 = vmatmul.f32.gmra.mxu0 %v978
      %v1000 = vpop.f32.mrf.mxu0
      %v1001 = vadd.f32 0.0, %v1000
      %1002 = vmatmul.f32.gmra.mxu0 %v981
      %v1003 = vpop.f32.mrf.mxu0
      %v1004 = vadd.f32 0.0, %v1003
      %1005 = vdwg.mxu0
      %v1007 = vsel %vm655, %v719, 0
      %v1010 = vsel %vm655, %v720, 0
      %1012 = vmatpush.msra.mxu0 0.0
      %1013 = vmatpush.msra.mxu0 0.0
      %1014 = vmatpush.msra.mxu0 0.0
      %1015 = vmatpush.msra.mxu0 0.0
      %1016 = vmatpush.msra.mxu0 0.0
      %1017 = vmatpush.msra.mxu0 0.0
      %1018 = vmatpush.msra.mxu0 0.0
      %1019 = vmatpush.msra.mxu0 0.0
      %1020 = vmatpush.msra.mxu0 0.0
      %1021 = vmatpush.msra.mxu0 0.0
      %1022 = vmatpush.msra.mxu0 0.0
      %1023 = vmatpush.msra.mxu0 0.0
      %1024 = vmatpush.msra.mxu0 0.0
      %1025 = vmatpush.msra.mxu0 0.0
      %1026 = vmatpush.msra.mxu0 %v817
      %1027 = vmatpush.msra.mxu0 %v814
      %1028 = vmatmul.f32.gmra.mxu0 %v1007
      %v1029 = vpop.f32.mrf.mxu0
      %v1030 = vadd.f32 %v1001, %v1029
      %1031 = vmatmul.f32.gmra.mxu0 %v1010
      %v1032 = vpop.f32.mrf.mxu0
      %v1033 = vadd.f32 %v1004, %v1032
      %1034 = vdwg.mxu0
      %1035 = vst.msk [vmem:[%s473] sm:$0xff] %vm655, %v1030
      %1036 = vst.msk [vmem:[%s473 + $0x8] sm:$0xff] %vm655, %v1033
      %p1037 = scmp.lt.s32.totalorder %s23, 1
      %s1038 = scalar_select %p1037, %s23, 1
      %s1039 = smul.addr %s1038, 2
      %s1040 = smul.addr %s1039, 8
      %s1041 = scalar_lea.vmem %s12, %s1040
      // Predicated region
      $region69: #{vision_agent_attention.1} parent=67 // pred_check
        %p1042 = pneg %p313
      $region70: #{vision_agent_attention.1} parent=67 // pred_check_branch
        %1044 = sbr.rel (%p1042) target = $region72
      $region71: #{vision_agent_attention.1} parent=67 // pred_region
        _
      $region72: #{vision_agent_attention.1} parent=67 // pred_fallthru
        _
    $region68: #{vision_agent_attention.1} parent=5 // pred_fallthru
      _
    %p1045 = scmp.le.s32.totalorder 2, %s18
    // Predicated region
    $region73: #{vision_agent_attention.1} parent=5 // pred_check
      %p1046 = pneg %p1045
    $region74: #{vision_agent_attention.1} parent=5 // pred_check_branch
      %1048 = sbr.rel (%p1046) target = $region76
    $region75: #{vision_agent_attention.1} parent=5 // pred_region
      %s1049 = ssub.s32 %s18, 2
      // Predicated region
      $region77: #{vision_agent_attention.1} parent=75 // pred_check
        %p1050 = pneg %p319
      $region78: #{vision_agent_attention.1} parent=75 // pred_check_branch
        %1052 = sbr.rel (%p1050) target = $region80
      $region79: #{vision_agent_attention.1} parent=75 // pred_region
        %p1053 = scmp.lt.s32.totalorder %s24, 1
        %s1054 = scalar_select %p1053, %s24, 1
        %s1055 = smul.addr %s1054, 2
        %s1056 = smul.addr %s1055, 8
        %s1057 = scalar_lea.vmem %s12, %s1056
      $region80: #{vision_agent_attention.1} parent=75 // pred_fallthru
        _
    $region76: #{vision_agent_attention.1} parent=5 // pred_fallthru
      _
  $region6: #{vision_agent_attention.1} parent=0 // loop_footer
    %s22 = sadd.s32 1, %s18
  $region7: #{vision_agent_attention.1} parent=0 // loop_footer_branch
    %17 = sbr.rel target = $region3
  $region8: #{vision_agent_attention.1} parent=0 // loop_exit
    _

</llo_original>
